<compile_context>
chip_gen: v6e
topology: v6e:2x2x1
jax: 0.10.0
libtpu: 0.0.40
codegen_flags: <defaults>
</compile_context>

<pallas_src>
import math
import functools
from typing import NamedTuple

import jax
import jax.numpy as jnp
from jax import lax
from jax.experimental import pallas as pl
from jax.experimental.pallas import tpu as pltpu


def _round_up(x, m):
    return ((x + m - 1) // m) * m


def _fit_tile(dim, tile, align):
    """Clamp a requested tile size to the (padded) problem size; return (tile, padded_dim)."""
    tile = _round_up(min(tile, _round_up(dim, align)), align)
    return tile, _round_up(dim, tile)


# ----------------------------------------------------------------------------- weight prep


class PreparedWeight(NamedTuple):
    wt_mm: jax.Array      # (d_pad, c_pad) compute_dtype: W^T, zero padded
    w_norm: jax.Array     # (c,) f32 per-class weight norms
    c: int
    d: int
    c_pad: int
    d_pad: int
    tc: int
    tk: int
    compute_dtype: object


def prepare_weight(weight, *, tc=1024, tk=2048, compute_dtype=jnp.bfloat16):
    """One-time (per weight update) preprocessing: transpose, pad, cast, norms.

    Hoisted out of the per-call path so every forward does not pay an O(C*D) HBM
    transpose before the kernel starts.
    """
    weight = weight.astype(jnp.float32)
    c, d = weight.shape
    tc_, c_pad = _fit_tile(c, tc, 128)
    tk_, d_pad = _fit_tile(d, tk, 128)
    wt_mm = jnp.zeros((d_pad, c_pad), compute_dtype).at[:d, :c].set(
        weight.T.astype(compute_dtype))
    w_norm = jnp.sqrt(jnp.sum(weight * weight, axis=1))
    return PreparedWeight(wt_mm, w_norm, c, d, c_pad, d_pad, tc_, tk_, compute_dtype)


# ----------------------------------------------------------------------------- kernel


def _lsoftmax_kernel(feats_ref, wt_ref, side_ref, out_ref, *,
                     cm_2n, pow_cos, pow_sin2, cos_thresholds):
    """Tiled GEMM with a fused per-tile large-margin rewrite of the target logits."""
    # NOTE: program_id / num_programs are read at the top level of the kernel body
    # (never inside pl.when bodies) so both TPU and the interpret path lower them.
    ci = pl.program_id(0)                 # C-tile index (leading "parallel" axis)
    k = pl.program_id(2)                  # reduction step (innermost, "arbitrary")
    nk = pl.num_programs(2)

    # One MXU matmul per grid step, f32 accumulation.
    partial = jnp.dot(feats_ref[...], wt_ref[...], preferred_element_type=jnp.float32)

    @pl.when(k == 0)
    def _():
        out_ref[...] = jnp.zeros(out_ref.shape, jnp.float32)

    @pl.when(k != nk - 1)
    def _():
        out_ref[...] += partial

    @pl.when(k == nk - 1)
    def _():
        # Fused final accumulation + margin epilogue (saves one f32 RMW of the tile).
        logits = out_ref[...] + partial                       # (tn, tc) f32, fully reduced
        tn, tc = logits.shape

        side = side_ref[...]                                  # (tn, 128) f32, lane-dense
        wf = jnp.maximum(side[:, 0:1], 1e-12)                 # ||W[target]|| * ||feat||
        tgt = side[:, 1:2].astype(jnp.int32)                  # exact for C < 2**24
        s = side[:, 2:3]                                      # 1 / (1 + beta)

        # Global class id of every lane in this C tile vs. the per-row target.
        col = lax.broadcasted_iota(jnp.int32, (tn, tc), 1) + ci * tc
        is_t = col == tgt                                     # at most one True per row

        # Target logit within this tile (0 and fully masked out if target not in tile).
        logit_t = jnp.sum(jnp.where(is_t, logits, 0.0), axis=1, keepdims=True)  # (tn, 1)

        cos_theta = jnp.clip(logit_t / wf, -1.0, 1.0)
        sin2_theta = 1.0 - cos_theta * cos_theta

        # Eq. 7: cos(m*theta) = sum_n Cm_2n[n] * cos^pow_cos[n] * (sin^2)^pow_sin2[n]
        cos_m_theta = jnp.zeros_like(cos_theta)
        for coef, p_c, p_s in zip(cm_2n, pow_cos, pow_sin2):
            cos_m_theta = cos_m_theta + coef * (cos_theta ** p_c) * (sin2_theta ** p_s)

        # kfold = floor(theta*m/pi) == #{j : cos_theta <= cos(j*pi/m)}; (-1)^k via parity.
        kfold = jnp.zeros_like(cos_theta)
        sign = jnp.ones_like(cos_theta)
        for thr in cos_thresholds:
            hit = (cos_theta <= thr).astype(jnp.float32)
            kfold = kfold + hit
            sign = sign * (1.0 - 2.0 * hit)

        logit_t_new = wf * (sign * cos_m_theta - 2.0 * kfold)
        # (logit_t_new + beta*logit_t) / (1+beta)  with  s = 1/(1+beta)
        adjusted = s * logit_t_new + (1.0 - s) * logit_t

        out_ref[...] = jnp.where(is_t, adjusted, logits)


# ----------------------------------------------------------------------------- wrapper


def l_softmax_linear(feats, prepared: PreparedWeight, targets=None, *,
                     margin=3, beta=1000.0, tn=512):
    """Forward pass of L_SoftmaxLinear. Returns logits (N, out_features), f32.

    feats: (N, D); prepared: output of prepare_weight(weight); targets: (N,) int or None.
    """
    pw = prepared
    feats = feats.astype(jnp.float32)
    n, d = feats.shape
    assert d == pw.d, "feature dim mismatch with prepared weight"
    cd = pw.compute_dtype

    if targets is None:
        # Inference: XLA's GEMM is already at roofline for a plain FC.
        logits = jnp.dot(feats.astype(cd), pw.wt_mm[:d],
                         preferred_element_type=jnp.float32)
        return logits[:, :pw.c]

    tn_, n_pad = _fit_tile(n, tn, 8)
    tc_, tk_ = pw.tc, pw.tk

    feats_mm = jnp.zeros((n_pad, pw.d_pad), cd).at[:n, :d].set(feats.astype(cd))

    # Hoisted O(N*D)/O(N) side work (f32): ||W[target]||*||feat||, target id, 1/(1+beta)
    # packed into one lane-dense (n_pad, 128) block.
    f_norm = jnp.sqrt(jnp.sum(feats * feats, axis=1))
    tgt = targets.astype(jnp.int32)
    wf = jnp.maximum(pw.w_norm[tgt] * f_norm, 1e-12)
    s = jnp.float32(1.0) / (jnp.float32(1.0) + jnp.asarray(beta, jnp.float32))

    side = jnp.zeros((n_pad, 128), jnp.float32)
    side = side.at[:, 1].set(-1.0)                        # padded rows: never match a class
    side = side.at[:n, 0].set(wf)
    side = side.at[:n, 1].set(tgt.astype(jnp.float32))
    side = side.at[:, 2].set(s)

    # Static margin-expansion coefficients (mirror of the module buffers).
    cm = [float(math.comb(margin, kk)) for kk in range(0, margin + 1, 2)]
    cm = [(-v if i % 2 == 1 else v) for i, v in enumerate(cm)]           # Cm_2n
    p_cos = [margin - kk for kk in range(0, margin + 1, 2)]              # pow_cos
    p_sin2 = list(range(1 + margin // 2))                                # pow_sin2
    thrs = [float(math.cos(j * math.pi / margin)) for j in range(1, margin)]

    kernel = functools.partial(
        _lsoftmax_kernel, cm_2n=tuple(cm), pow_cos=tuple(p_cos),
        pow_sin2=tuple(p_sin2), cos_thresholds=tuple(thrs))

    # C leading & parallel: classification heads keep >=2 megacore tiles even for small N.
    grid = (pw.c_pad // tc_, n_pad // tn_, pw.d_pad // tk_)
    feats_spec = pl.BlockSpec((tn_, tk_), lambda j, i, k: (i, k))
    wt_spec = pl.BlockSpec((tk_, tc_), lambda j, i, k: (k, j))
    side_spec = pl.BlockSpec((tn_, 128), lambda j, i, k: (i, 0))
    out_spec = pl.BlockSpec((tn_, tc_), lambda j, i, k: (i, j))

    out = pl.pallas_call(
        kernel,
        out_shape=jax.ShapeDtypeStruct((n_pad, pw.c_pad), jnp.float32),
        grid=grid,
        in_specs=[feats_spec, wt_spec, side_spec],
        out_specs=out_spec,
        compiler_params=pltpu.CompilerParams(
            dimension_semantics=("parallel", "parallel", "arbitrary"),
            vmem_limit_bytes=48 * 1024 * 1024,
        ),
    )(feats_mm, pw.wt_mm, side)
    return out[:n, :pw.c]


# ----------------------------------------------------------------------------- reference / demo


def _ref_forward(feats, weight, targets, *, margin, beta, mm_dtype):
    """Pure-JAX reference (mirrors the PyTorch module) with a matching matmul dtype."""
    logits = jnp.dot(feats.astype(mm_dtype), weight.astype(mm_dtype).T,
                     preferred_element_type=jnp.float32)
    if targets is None:
        return logits
    idx = jnp.arange(feats.shape[0])
    lt = logits[idx, targets]
    wn = jnp.linalg.norm(weight, axis=1)[targets]
    fn = jnp.linalg.norm(feats, axis=1)
    wf = jnp.maximum(wn * fn, 1e-12)
    ct = jnp.clip(lt / wf, -1.0, 1.0)
    sin2 = 1.0 - ct * ct
    cm = [float(math.comb(margin, kk)) for kk in range(0, margin + 1, 2)]
    cm = [(-v if i % 2 == 1 else v) for i, v in enumerate(cm)]
    cos_m = jnp.zeros_like(ct)
    for i, coef in enumerate(cm):
        cos_m = cos_m + coef * ct ** (margin - 2 * i) * sin2 ** i
    kk = jnp.floor(jnp.arccos(ct) * margin / math.pi)
    sgn = 1.0 - 2.0 * jnp.mod(kk, 2.0)
    lt_new = wf * (sgn * cos_m - 2.0 * kk)
    adj = (lt_new + beta * lt) / (1.0 + beta)
    return logits.at[idx, targets].set(adj)


if __name__ == "__main__":
    N, D, C, MARGIN, BETA = 8, 32, 16, 3, 1000.0

    key = jax.random.PRNGKey(0)
    k1, k2, k3 = jax.random.split(key, 3)
    feats = jax.random.normal(k1, (N, D), dtype=jnp.float32)
    xavier_std = math.sqrt(2.0 / (D + C))                 # xavier_normal_ on (C, D)
    weight = jax.random.normal(k2, (C, D), dtype=jnp.float32) * xavier_std
    targets = jax.random.randint(k3, (N,), 0, C, dtype=jnp.int32)

    for mm_dtype, tol in ((jnp.float32, 1e-2), (jnp.bfloat16, 2e-2)):
        pw = prepare_weight(weight, compute_dtype=mm_dtype)   # once per weight update
        logits_eval = l_softmax_linear(feats, pw, None, margin=MARGIN, beta=BETA)
        logits_train = l_softmax_linear(feats, pw, targets, margin=MARGIN, beta=BETA)
        jax.block_until_ready((logits_eval, logits_train))

        ref_eval = _ref_forward(feats, weight, None, margin=MARGIN, beta=BETA,
                                mm_dtype=mm_dtype)
        ref_train = _ref_forward(feats, weight, targets, margin=MARGIN, beta=BETA,
                                 mm_dtype=mm_dtype)
        assert logits_eval.shape == (N, C) and logits_train.shape == (N, C)
        assert jnp.allclose(logits_eval, ref_eval, atol=tol, rtol=tol), mm_dtype
        assert jnp.allclose(logits_train, ref_train, atol=tol, rtol=tol), mm_dtype

    print("KERNEL_OK")
</pallas_src>

<mosaic_0001>
module attributes {stable_mosaic.version = 11 : i64} {
  func.func @_lsoftmax_kernel(%arg0: i32, %arg1: i32, %arg2: i32, %arg3: memref<8x128xf32, #tpu.memory_space<vmem>>, %arg4: memref<128x128xf32, #tpu.memory_space<vmem>>, %arg5: memref<8x128xf32, #tpu.memory_space<vmem>>, %arg6: memref<8x128xf32, #tpu.memory_space<vmem>>) attributes {dimension_semantics = [#tpu.dimension_semantics<parallel>, #tpu.dimension_semantics<parallel>, #tpu.dimension_semantics<arbitrary>], iteration_bounds = array<i64: 1, 1, 1>, scalar_prefetch = 0 : i64, scratch_operands = 0 : i64, tpu.core_type = #tpu.core_type<tc>, window_params = [{transform_indices = @transform_0, window_bounds = array<i64: 8, 128>}, {transform_indices = @transform_1, window_bounds = array<i64: 128, 128>}, {transform_indices = @transform_2, window_bounds = array<i64: 8, 128>}, {transform_indices = @transform_3, window_bounds = array<i64: 8, 128>}]} {
    %c0 = arith.constant 0 : index
    %c0_0 = arith.constant 0 : index
    %0 = vector.load %arg3[%c0, %c0_0] : memref<8x128xf32, #tpu.memory_space<vmem>>, vector<8x128xf32>
    %c0_1 = arith.constant 0 : index
    %c0_2 = arith.constant 0 : index
    %1 = vector.load %arg4[%c0_1, %c0_2] : memref<128x128xf32, #tpu.memory_space<vmem>>, vector<128x128xf32>
    %cst = arith.constant dense<0.000000e+00> : vector<8x128xf32>
    %2 = tpu.matmul %0, %1, %cst {dimension_numbers = #tpu.dot_dimension_numbers<[1], [0], [0], [1], [0, 0, 1, 1], [], []>} : vector<8x128xf32>, vector<128x128xf32>, vector<8x128xf32> -> vector<8x128xf32>
    %c0_i32 = arith.constant 0 : i32
    %3 = arith.cmpi eq, %arg2, %c0_i32 : i32
    %4 = arith.extui %3 : i1 to i32
    %c0_i32_3 = arith.constant 0 : i32
    %5 = arith.cmpi ne, %4, %c0_i32_3 : i32
    scf.if %5 {
      %cst_8 = arith.constant 0.000000e+00 : f32
      %12 = vector.broadcast %cst_8 : f32 to vector<8x128xf32>
      %c0_9 = arith.constant 0 : index
      %c0_10 = arith.constant 0 : index
      %13 = vector.load %arg6[%c0_9, %c0_10] : memref<8x128xf32, #tpu.memory_space<vmem>>, vector<8x128xf32>
      tpu.vector_store %arg6[%c0_9, %c0_10], %12 {strides = array<i32>} : memref<8x128xf32, #tpu.memory_space<vmem>>, vector<8x128xf32>,
    } else {
    }
    %c0_i32_4 = arith.constant 0 : i32
    %6 = arith.cmpi ne, %arg2, %c0_i32_4 : i32
    %7 = arith.extui %6 : i1 to i32
    %c0_i32_5 = arith.constant 0 : i32
    %8 = arith.cmpi ne, %7, %c0_i32_5 : i32
    scf.if %8 {
      %c0_8 = arith.constant 0 : index
      %c0_9 = arith.constant 0 : index
      %12 = vector.load %arg6[%c0_8, %c0_9] : memref<8x128xf32, #tpu.memory_space<vmem>>, vector<8x128xf32>
      %13 = arith.addf %12, %2 : vector<8x128xf32>
      %c0_10 = arith.constant 0 : index
      %c0_11 = arith.constant 0 : index
      %14 = vector.load %arg6[%c0_10, %c0_11] : memref<8x128xf32, #tpu.memory_space<vmem>>, vector<8x128xf32>
      tpu.vector_store %arg6[%c0_10, %c0_11], %13 {strides = array<i32>} : memref<8x128xf32, #tpu.memory_space<vmem>>, vector<8x128xf32>,
    } else {
    }
    %c0_i32_6 = arith.constant 0 : i32
    %9 = arith.cmpi eq, %arg2, %c0_i32_6 : i32
    %10 = arith.extui %9 : i1 to i32
    %c0_i32_7 = arith.constant 0 : i32
    %11 = arith.cmpi ne, %10, %c0_i32_7 : i32
    scf.if %11 {
      %c0_8 = arith.constant 0 : index
      %c0_9 = arith.constant 0 : index
      %12 = vector.load %arg6[%c0_8, %c0_9] : memref<8x128xf32, #tpu.memory_space<vmem>>, vector<8x128xf32>
      %13 = arith.addf %12, %2 : vector<8x128xf32>
      %c0_10 = arith.constant 0 : index
      %c0_11 = arith.constant 0 : index
      %14 = vector.load %arg5[%c0_10, %c0_11] : memref<8x128xf32, #tpu.memory_space<vmem>>, vector<8x128xf32>
      %15 = vector.extract_strided_slice %14 {offsets = [0, 0], sizes = [8, 1], strides = [1, 1]} : vector<8x128xf32> to vector<8x1xf32>
      %cst_12 = arith.constant 9.99999996E-13 : f32
      %16 = vector.broadcast %cst_12 : f32 to vector<8x1xf32>
      %17 = arith.maximumf %15, %16 : vector<8x1xf32>
      %18 = vector.extract_strided_slice %14 {offsets = [0, 1], sizes = [8, 1], strides = [1, 1]} : vector<8x128xf32> to vector<8x1xf32>
      %19 = arith.fptosi %18 : vector<8x1xf32> to vector<8x1xi32>
      %20 = vector.extract_strided_slice %14 {offsets = [0, 2], sizes = [8, 1], strides = [1, 1]} : vector<8x128xf32> to vector<8x1xf32>
      %21 = tpu.iota {dimensions = array<i32: 1>} : vector<8x128xi32>
      %c128_i32 = arith.constant 128 : i32
      %22 = arith.muli %arg0, %c128_i32 : i32
      %23 = vector.broadcast %22 : i32 to vector<8x128xi32>
      %24 = arith.addi %21, %23 : vector<8x128xi32>
      %25 = vector.broadcast %19 : vector<8x1xi32> to vector<8x128xi32>
      %26 = arith.cmpi eq, %24, %25 : vector<8x128xi32>
      %cst_13 = arith.constant 0.000000e+00 : f32
      %27 = vector.broadcast %cst_13 : f32 to vector<8x128xf32>
      %28 = arith.select %26, %13, %27 : vector<8x128xi1>, vector<8x128xf32>
      %cst_14 = arith.constant dense<0.000000e+00> : vector<8xf32>
      %29 = vector.multi_reduction <add>, %28, %cst_14 [1] : vector<8x128xf32> to vector<8xf32>
      %30 = vector.shape_cast %29 : vector<8xf32> to vector<8x1xf32>
      %31 = arith.divf %30, %17 : vector<8x1xf32>
      %cst_15 = arith.constant -1.000000e+00 : f32
      %cst_16 = arith.constant 1.000000e+00 : f32
      %32 = vector.broadcast %cst_15 : f32 to vector<8x1xf32>
      %33 = arith.maximumf %32, %31 : vector<8x1xf32>
      %34 = vector.broadcast %cst_16 : f32 to vector<8x1xf32>
      %35 = arith.minimumf %34, %33 : vector<8x1xf32>
      %36 = arith.mulf %35, %35 : vector<8x1xf32>
      %cst_17 = arith.constant 1.000000e+00 : f32
      %37 = vector.broadcast %cst_17 : f32 to vector<8x1xf32>
      %38 = arith.subf %37, %36 : vector<8x1xf32>
      %cst_18 = arith.constant 0.000000e+00 : f32
      %39 = vector.broadcast %cst_18 : f32 to vector<8x1xf32>
      %40 = arith.mulf %35, %35 : vector<8x1xf32>
      %41 = arith.mulf %35, %40 : vector<8x1xf32>
      %cst_19 = arith.constant 1.000000e+00 : f32
      %42 = vector.broadcast %cst_19 : f32 to vector<8x1xf32>
      %43 = arith.mulf %42, %41 : vector<8x1xf32>
      %cst_20 = arith.constant 1.000000e+00 : f32
      %44 = vector.broadcast %cst_20 : f32 to vector<8x1xf32>
      %45 = arith.mulf %43, %44 : vector<8x1xf32>
      %46 = arith.addf %39, %45 : vector<8x1xf32>
      %cst_21 = arith.constant -3.000000e+00 : f32
      %47 = vector.broadcast %cst_21 : f32 to vector<8x1xf32>
      %48 = arith.mulf %47, %35 : vector<8x1xf32>
      %49 = arith.mulf %48, %38 : vector<8x1xf32>
      %50 = arith.addf %46, %49 : vector<8x1xf32>
      %cst_22 = arith.constant 0.000000e+00 : f32
      %51 = vector.broadcast %cst_22 : f32 to vector<8x1xf32>
      %cst_23 = arith.constant 1.000000e+00 : f32
      %52 = vector.broadcast %cst_23 : f32 to vector<8x1xf32>
      %cst_24 = arith.constant 5.000000e-01 : f32
      %53 = vector.broadcast %cst_24 : f32 to vector<8x1xf32>
      %54 = arith.cmpf ole, %35, %53 : vector<8x1xf32>
      %55 = arith.extui %54 : vector<8x1xi1> to vector<8x1xi32>
      %56 = arith.sitofp %55 : vector<8x1xi32> to vector<8x1xf32>
      %57 = arith.addf %51, %56 : vector<8x1xf32>
      %cst_25 = arith.constant 2.000000e+00 : f32
      %58 = vector.broadcast %cst_25 : f32 to vector<8x1xf32>
      %59 = arith.mulf %58, %56 : vector<8x1xf32>
      %cst_26 = arith.constant 1.000000e+00 : f32
      %60 = vector.broadcast %cst_26 : f32 to vector<8x1xf32>
      %61 = arith.subf %60, %59 : vector<8x1xf32>
      %62 = arith.mulf %52, %61 : vector<8x1xf32>
      %cst_27 = arith.constant -5.000000e-01 : f32
      %63 = vector.broadcast %cst_27 : f32 to vector<8x1xf32>
      %64 = arith.cmpf ole, %35, %63 : vector<8x1xf32>
      %65 = arith.extui %64 : vector<8x1xi1> to vector<8x1xi32>
      %66 = arith.sitofp %65 : vector<8x1xi32> to vector<8x1xf32>
      %67 = arith.addf %57, %66 : vector<8x1xf32>
      %cst_28 = arith.constant 2.000000e+00 : f32
      %68 = vector.broadcast %cst_28 : f32 to vector<8x1xf32>
      %69 = arith.mulf %68, %66 : vector<8x1xf32>
      %cst_29 = arith.constant 1.000000e+00 : f32
      %70 = vector.broadcast %cst_29 : f32 to vector<8x1xf32>
      %71 = arith.subf %70, %69 : vector<8x1xf32>
      %72 = arith.mulf %62, %71 : vector<8x1xf32>
      %73 = arith.mulf %72, %50 : vector<8x1xf32>
      %cst_30 = arith.constant 2.000000e+00 : f32
      %74 = vector.broadcast %cst_30 : f32 to vector<8x1xf32>
      %75 = arith.mulf %74, %67 : vector<8x1xf32>
      %76 = arith.subf %73, %75 : vector<8x1xf32>
      %77 = arith.mulf %17, %76 : vector<8x1xf32>
      %78 = arith.mulf %20, %77 : vector<8x1xf32>
      %cst_31 = arith.constant 1.000000e+00 : f32
      %79 = vector.broadcast %cst_31 : f32 to vector<8x1xf32>
      %80 = arith.subf %79, %20 : vector<8x1xf32>
      %81 = arith.mulf %80, %30 : vector<8x1xf32>
      %82 = arith.addf %78, %81 : vector<8x1xf32>
      %83 = vector.shape_cast %82 : vector<8x1xf32> to vector<8x1xf32>
      %84 = vector.broadcast %83 : vector<8x1xf32> to vector<8x128xf32>
      %85 = arith.select %26, %84, %13 : vector<8x128xi1>, vector<8x128xf32>
      %c0_32 = arith.constant 0 : index
      %c0_33 = arith.constant 0 : index
      %86 = vector.load %arg6[%c0_32, %c0_33] : memref<8x128xf32, #tpu.memory_space<vmem>>, vector<8x128xf32>
      tpu.vector_store %arg6[%c0_32, %c0_33], %85 {strides = array<i32>} : memref<8x128xf32, #tpu.memory_space<vmem>>, vector<8x128xf32>,
    } else {
    }
    return
  }
  func.func @transform_0(%arg0: i32, %arg1: i32, %arg2: i32) -> (i32, i32) {
    %c0_i32 = arith.constant 0 : i32
    return %arg1, %arg2 : i32, i32
  }
  func.func @transform_1(%arg0: i32, %arg1: i32, %arg2: i32) -> (i32, i32) {
    %c0_i32 = arith.constant 0 : i32
    return %arg2, %arg0 : i32, i32
  }
  func.func @transform_2(%arg0: i32, %arg1: i32, %arg2: i32) -> (i32, i32) {
    %c0_i32 = arith.constant 0 : i32
    %c0_i32_0 = arith.constant 0 : i32
    return %arg1, %c0_i32 : i32, i32
  }
  func.func @transform_3(%arg0: i32, %arg1: i32, %arg2: i32) -> (i32, i32) {
    %c0_i32 = arith.constant 0 : i32
    return %arg1, %arg0 : i32, i32
  }
}

</mosaic_0001>

<llo_original>
// kernel: tpu_custom_call.1
$region0: #{tpu_custom_call.1}
  #allocation0 [shape = 'u32[]', space=smem, size = 0x4, offset = 0x4, fixed_abs, tag = 'smem constant byte address 0x4 - core index']
  #allocation1 [shape = 'u32[144,128]{1,0:T(1,128)}', space=vmem, size = 0x12000, scoped, tag = 'internal scratch']
  %s0 = inlined_call_operand.hbm [shape: f32[8,128], index: 0, kind: input, shape index: {}]
  %s1 = inlined_call_operand.hbm [shape: f32[128,128], index: 1, kind: input, shape index: {}]
  %s2 = inlined_call_operand.hbm [shape: f32[8,128], index: 2, kind: input, shape index: {}]
  %s3 = inlined_call_operand.hbm [shape: f32[8,128], index: 3, kind: output, shape index: {}]
  %s4 = sld [smem:[#allocation0]]
  $region46: #{tpu_custom_call.1} parent=0
    _
  %s6 = ssub.s32 1, %s4
  %s7 = scalar_select 0, %s6, %s4
  $region1: #{tpu_custom_call.1} parent=0
    #allocation2 [shape = 'u8[4096]{0}', space=vmem, size = 0x1000, scoped, tag = 'input window, operand 0, single buffered']
    #allocation3 [shape = 's32[1]{0}', space=sflag, size = 0x4, scoped, tag = 'scoped memory for tpu_custom_call.1']
    #allocation4 [shape = 's32[1]{0}', space=sflag, size = 0x4, scoped, tag = 'scoped memory for tpu_custom_call.1']
    #allocation5 [shape = 'u8[65536]{0}', space=vmem, size = 0x10000, scoped, tag = 'input window, operand 1, single buffered']
    #allocation6 [shape = 's32[1]{0}', space=sflag, size = 0x4, scoped, tag = 'scoped memory for tpu_custom_call.1']
    #allocation7 [shape = 'u8[4096]{0}', space=vmem, size = 0x1000, scoped, tag = 'input window, operand 2, single buffered']
    #allocation8 [shape = 'u8[4096]{0}', space=vmem, size = 0x1000, scoped, tag = 'output window, operand 0, single buffered']
    %8 = vsyncpa [#allocation3], 0
    %9 = vsyncpa [#allocation6], 0
    %10 = vsyncpa [#allocation4], 0
    // Predicated region
    $region2: #{tpu_custom_call.1} parent=1 // pred_check
      _
    $region3: #{tpu_custom_call.1} parent=1 // pred_check_branch
      %12 = sbr.rel (0) target = $region5
    $region4: #{tpu_custom_call.1} parent=1 // pred_region
      %s14 = ssub.s32 128, 128
      %15 = vsyncadd [#allocation3], %s14
      %s17 = sshll.u32 [#allocation2], 4
      %s18 = int_to_ptr.vmem [resolvable:$true] %s17
      %20 = dma.hbm_to_vmem [thread:$0]  %s0, 128, %s18, [#allocation3]
    $region5: #{tpu_custom_call.1} parent=1 // pred_fallthru
      _
    // Predicated region
    $region6: #{tpu_custom_call.1} parent=1 // pred_check
      _
    $region7: #{tpu_custom_call.1} parent=1 // pred_check_branch
      %22 = sbr.rel (0) target = $region9
    $region8: #{tpu_custom_call.1} parent=1 // pred_region
      %s24 = ssub.s32 2048, 2048
      %25 = vsyncadd [#allocation6], %s24
      %s26 = sshll.u32 [#allocation5], 4
      %s27 = int_to_ptr.vmem [resolvable:$true] %s26
      %32 = dma.hbm_to_vmem [thread:$0]  %s1, 2048, %s27, [#allocation6], 128, 128, 8
    $region9: #{tpu_custom_call.1} parent=1 // pred_fallthru
      _
    // Predicated region
    $region10: #{tpu_custom_call.1} parent=1 // pred_check
      _
    $region11: #{tpu_custom_call.1} parent=1 // pred_check_branch
      %34 = sbr.rel (0) target = $region13
    $region12: #{tpu_custom_call.1} parent=1 // pred_region
      %s36 = ssub.s32 128, 128
      %37 = vsyncadd [#allocation6], %s36
      %s39 = sshll.u32 [#allocation7], 4
      %s40 = int_to_ptr.vmem [resolvable:$true] %s39
      %42 = dma.hbm_to_vmem [thread:$0]  %s2, 128, %s40, [#allocation6]
    $region13: #{tpu_custom_call.1} parent=1 // pred_fallthru
      _
    // Predicated region
    $region14: #{tpu_custom_call.1} parent=1 // pred_check
      _
    $region15: #{tpu_custom_call.1} parent=1 // pred_check_branch
      %44 = sbr.rel (0) target = $region17
    $region16: #{tpu_custom_call.1} parent=1 // pred_region
      %45 = dma.done [#allocation3], 128
    $region17: #{tpu_custom_call.1} parent=1 // pred_fallthru
      _
    // Predicated region
    $region18: #{tpu_custom_call.1} parent=1 // pred_check
      _
    $region19: #{tpu_custom_call.1} parent=1 // pred_check_branch
      %47 = sbr.rel (0) target = $region21
    $region20: #{tpu_custom_call.1} parent=1 // pred_region
      %48 = dma.done [#allocation6], 2048
    $region21: #{tpu_custom_call.1} parent=1 // pred_fallthru
      _
    // Predicated region
    $region22: #{tpu_custom_call.1} parent=1 // pred_check
      _
    $region23: #{tpu_custom_call.1} parent=1 // pred_check_branch
      %50 = sbr.rel (0) target = $region25
    $region24: #{tpu_custom_call.1} parent=1 // pred_region
      %51 = dma.done [#allocation6], 128
    $region25: #{tpu_custom_call.1} parent=1 // pred_fallthru
      _
    %v52 = vld [vmem:[#allocation2] sm:$0xff]
    %v53 = vld [vmem:[#allocation5] sm:$0xff]
    %v54 = vld [vmem:[#allocation5 + $0x8] sm:$0xff]
    %v55 = vld [vmem:[#allocation5 + $0x10] sm:$0xff]
    %v56 = vld [vmem:[#allocation5 + $0x18] sm:$0xff]
    %v57 = vld [vmem:[#allocation5 + $0x20] sm:$0xff]
    %v58 = vld [vmem:[#allocation5 + $0x28] sm:$0xff]
    %v59 = vld [vmem:[#allocation5 + $0x30] sm:$0xff]
    %v60 = vld [vmem:[#allocation5 + $0x38] sm:$0xff]
    %v61 = vld [vmem:[#allocation5 + $0x40] sm:$0xff]
    %v62 = vld [vmem:[#allocation5 + $0x48] sm:$0xff]
    %v63 = vld [vmem:[#allocation5 + $0x50] sm:$0xff]
    %v64 = vld [vmem:[#allocation5 + $0x58] sm:$0xff]
    %v65 = vld [vmem:[#allocation5 + $0x60] sm:$0xff]
    %v66 = vld [vmem:[#allocation5 + $0x68] sm:$0xff]
    %v67 = vld [vmem:[#allocation5 + $0x70] sm:$0xff]
    %v68 = vld [vmem:[#allocation5 + $0x78] sm:$0xff]
    %69 = vmatprep.subr.mxu0 0.0
    %70 = vmatpush1.msra.mxu0 %v68
    %71 = vmatprep.subr.mxu0 0.0
    %72 = vmatpush1.msra.mxu0 %v67
    %73 = vmatprep.subr.mxu0 0.0
    %74 = vmatpush1.msra.mxu0 %v66
    %75 = vmatprep.subr.mxu0 0.0
    %76 = vmatpush1.msra.mxu0 %v65
    %77 = vmatprep.subr.mxu0 0.0
    %78 = vmatpush1.msra.mxu0 %v64
    %79 = vmatprep.subr.mxu0 0.0
    %80 = vmatpush1.msra.mxu0 %v63
    %81 = vmatprep.subr.mxu0 0.0
    %82 = vmatpush1.msra.mxu0 %v62
    %83 = vmatprep.subr.mxu0 0.0
    %84 = vmatpush1.msra.mxu0 %v61
    %85 = vmatprep.subr.mxu0 0.0
    %86 = vmatpush1.msra.mxu0 %v60
    %87 = vmatprep.subr.mxu0 0.0
    %88 = vmatpush1.msra.mxu0 %v59
    %89 = vmatprep.subr.mxu0 0.0
    %90 = vmatpush1.msra.mxu0 %v58
    %91 = vmatprep.subr.mxu0 0.0
    %92 = vmatpush1.msra.mxu0 %v57
    %93 = vmatprep.subr.mxu0 0.0
    %94 = vmatpush1.msra.mxu0 %v56
    %95 = vmatprep.subr.mxu0 0.0
    %96 = vmatpush1.msra.mxu0 %v55
    %97 = vmatprep.subr.mxu0 0.0
    %98 = vmatpush1.msra.mxu0 %v54
    %99 = vmatprep.subr.mxu0 0.0
    %100 = vmatpush1.msra.mxu0 %v53
    %101 = vmatprep.subr.mxu0 0.0
    %102 = vmatpush2.msra.mxu0 0.0
    %103 = vmatprep.subr.mxu0 0.0
    %104 = vmatpush2.msra.mxu0 0.0
    %105 = vmatprep.subr.mxu0 0.0
    %106 = vmatpush2.msra.mxu0 0.0
    %107 = vmatprep.subr.mxu0 0.0
    %108 = vmatpush2.msra.mxu0 0.0
    %109 = vmatprep.subr.mxu0 0.0
    %110 = vmatpush2.msra.mxu0 0.0
    %111 = vmatprep.subr.mxu0 0.0
    %112 = vmatpush2.msra.mxu0 0.0
    %113 = vmatprep.subr.mxu0 0.0
    %114 = vmatpush2.msra.mxu0 0.0
    %115 = vmatprep.subr.mxu0 0.0
    %116 = vmatpush2.msra.mxu0 0.0
    %117 = vmatprep.subr.mxu0 0.0
    %118 = vmatpush2.msra.mxu0 0.0
    %119 = vmatprep.subr.mxu0 0.0
    %120 = vmatpush2.msra.mxu0 0.0
    %121 = vmatprep.subr.mxu0 0.0
    %122 = vmatpush2.msra.mxu0 0.0
    %123 = vmatprep.subr.mxu0 0.0
    %124 = vmatpush2.msra.mxu0 0.0
    %125 = vmatprep.subr.mxu0 0.0
    %126 = vmatpush2.msra.mxu0 0.0
    %127 = vmatprep.subr.mxu0 0.0
    %128 = vmatpush2.msra.mxu0 0.0
    %129 = vmatprep.subr.mxu0 0.0
    %130 = vmatpush2.msra.mxu0 0.0
    %131 = vmatprep.subr.mxu0 0.0
    %132 = vmatpush2.msra.mxu0 0.0
    %133 = vmatprep.mubr.f32.mxu0 0.0
    %134 = vmatmul.mubr.f32.gmra.mxu0 %v52
    %v135 = vpop.f32.mrf.mxu0
    %v136 = vadd.f32 0.0, %v135
    %v137 = vpop.f32.mrf.mxu0
    %138 = vdwg.mxu0
    %p139 = scmp.eq.s32.totalorder 0, 0
    // Predicated region
    $region26: #{tpu_custom_call.1} parent=1 // pred_check
      %p140 = pneg %p139
    $region27: #{tpu_custom_call.1} parent=1 // pred_check_branch
      %142 = sbr.rel (%p140) target = $region29
    $region28: #{tpu_custom_call.1} parent=1 // pred_region
      %143 = vst [vmem:[#allocation8] sm:$0xff] 0.0
    $region29: #{tpu_custom_call.1} parent=1 // pred_fallthru
      _
    %p144 = scmp.ne.s32.totalorder 0, 0
    // Predicated region
    $region30: #{tpu_custom_call.1} parent=1 // pred_check
      %p145 = pneg %p144
    $region31: #{tpu_custom_call.1} parent=1 // pred_check_branch
      %147 = sbr.rel (%p145) target = $region33
    $region32: #{tpu_custom_call.1} parent=1 // pred_region
      %v148 = vld [vmem:[#allocation8] sm:$0xff]
      %v149 = vadd.f32 %v148, %v136
      %150 = vst [vmem:[#allocation8] sm:$0xff] %v149
    $region33: #{tpu_custom_call.1} parent=1 // pred_fallthru
      _
    // Predicated region
    $region34: #{tpu_custom_call.1} parent=1 // pred_check
      %p151 = pneg %p139
    $region35: #{tpu_custom_call.1} parent=1 // pred_check_branch
      %153 = sbr.rel (%p151) target = $region37
    $region36: #{tpu_custom_call.1} parent=1 // pred_region
      %v154 = vld [vmem:[#allocation8] sm:$0xff]
      %v155 = vadd.f32 %v154, %v136
      %v156 = vld [vmem:[#allocation7] sm:$0xff]
      %v157 = vmax.f32 %v156, 1e-12
      %v158 = vcvt.f32.s32.to.zero.pseudo %v156
      %v159 = vlaneseq
      %v160 = vand.u32 %v159, 127
      %s161 = smul.u32 0, 128
      %v162 = vstv %s161
      %v163 = vadd.s32 %v160, %v162
      %164 = vset.pattern.permute.xlu0 1
      %165 = vperm.xlu0 %164, %v158
      %v166 = vpop.permute.xlu0 %165
      %vm167 = vcmp.eq.s32.totalorder %v163, %v166
      %v168 = vsel %vm167, %v155, 0.0
      %169 = vadd.xlane.f32.xlu0 %v168
      %v170 = vpop.xlane.xlu0 %169
      %v171 = vrcp.pop %v157
      %v172 = vmul.f32 %v170, %v171
      %v173 = vmax.f32 %v172, -1.0
      %v174 = vmin.f32 %v173, 1.0
      %v175 = vmul.f32 %v174, %v174
      %v176 = vsub.f32 1.0, %v175
      %v177 = vmul.f32 %v174, %v175
      %v178 = vadd.f32 %v177, 0.0
      %v179 = vmul.f32 %v174, -3.0
      %v180 = vmul.f32 %v179, %v176
      %v181 = vadd.f32 %v178, %v180
      %vm182 = vcmp.le.f32.partialorder %v174, 0.5
      %v183 = vsel %vm182, 1, 0
      %v184 = vcvt.s32.f32 %v183
      %v185 = vadd.f32 %v184, 0.0
      %v186 = vmul.f32 %v184, 2.0
      %v187 = vsub.f32 1.0, %v186
      %vm188 = vcmp.le.f32.partialorder %v174, -0.5
      %v189 = vsel %vm188, 1, 0
      %v190 = vcvt.s32.f32 %v189
      %v191 = vadd.f32 %v185, %v190
      %v192 = vmul.f32 %v190, 2.0
      %v193 = vsub.f32 1.0, %v192
      %v194 = vmul.f32 %v187, %v193
      %v195 = vmul.f32 %v194, %v181
      %v196 = vmul.f32 %v191, 2.0
      %v197 = vsub.f32 %v195, %v196
      %v198 = vmul.f32 %v157, %v197
      %200 = vrot.lane.b32.xlu0 %v198, 2
      %v201 = vpop.permute.xlu0 %200
      %v203 = vmul.f32 %v156, %v201
      %v204 = vsub.f32 1.0, %v156
      %v205 = vmul.f32 %v204, %v170
      %v206 = vadd.f32 %v203, %v205
      %208 = vset.pattern.permute.xlu0 2
      %209 = vperm.xlu0 %208, %v206
      %v210 = vpop.permute.xlu0 %209
      %v212 = vsel %vm167, %v210, %v155
      %213 = vst [vmem:[#allocation8] sm:$0xff] %v212
    $region37: #{tpu_custom_call.1} parent=1 // pred_fallthru
      _
    // Predicated region
    $region38: #{tpu_custom_call.1} parent=1 // pred_check
      _
    $region39: #{tpu_custom_call.1} parent=1 // pred_check_branch
      %215 = sbr.rel (0) target = $region41
    $region40: #{tpu_custom_call.1} parent=1 // pred_region
      %s217 = ssub.s32 128, 128
      %218 = vsyncadd [#allocation4], %s217
      %s220 = sshll.u32 [#allocation8], 4
      %s221 = int_to_ptr.vmem [resolvable:$true] %s220
      %223 = dma.vmem_to_hbm [thread:$0]  %s221, 128, %s3, [#allocation4]
    $region41: #{tpu_custom_call.1} parent=1 // pred_fallthru
      _
    // Predicated region
    $region42: #{tpu_custom_call.1} parent=1 // pred_check
      _
    $region43: #{tpu_custom_call.1} parent=1 // pred_check_branch
      %225 = sbr.rel (0) target = $region45
    $region44: #{tpu_custom_call.1} parent=1 // pred_region
      %226 = dma.done [#allocation4], 128
    $region45: #{tpu_custom_call.1} parent=1 // pred_fallthru
      _
    %227 = vsyncpa [#allocation3], 1
    %228 = vsyncpa [#allocation6], 1
    %229 = vsyncpa [#allocation4], 1

</llo_original>
